<compile_context>
chip_gen: v6e
topology: v6e:2x2x1
jax: 0.10.0
libtpu: 0.0.40
codegen_flags: <defaults>
</compile_context>

<pallas_src>
import jax
import jax.numpy as jnp
from jax.experimental import pallas as pl
from jax.experimental.pallas import tpu as pltpu


_HIDDEN_CHUNK = 8  # one f32 sublane group


def simplenet_kernel(x_ref, w1_ref, b1_ref, w2_ref, b2_ref, o_ref):
    """One batch tile.

    Shapes (batch on the lane axis):
      x_ref : (D_in, TILE)     w1_ref: (H, D_in)    b1_ref: (H, 1)
      w2_ref: (H, D_out)       b2_ref: (D_out,) in SMEM
      o_ref : (D_out, TILE)
    """
    d_in = x_ref.shape[0]
    h_dim = w1_ref.shape[0]
    d_out = o_ref.shape[0]
    tile = x_ref.shape[1]

    x = x_ref[...]                                            # (D_in, TILE)

    # fc2 accumulators: one lane-dense row per logit.
    ys = [jnp.zeros((1, tile), jnp.float32) for _ in range(d_out)]

    # fc1 + ReLU + fc2 contraction, chunked over hidden rows so the live
    # (chunk, TILE) temp stays small (enables large batch tiles, incl. v7x).
    for h0 in range(0, h_dim, _HIDDEN_CHUNK):                 # static, H/8 iters
        hc = min(_HIDDEN_CHUNK, h_dim - h0)
        w1c = w1_ref[h0:h0 + hc, :]                           # (hc, D_in)
        # fc1 as VPU broadcast-FMAs (outer-product accumulation): D_in = 2 is
        # far too small to be worth MXU push/pop.
        h = w1c[:, 0:1] * x[0:1, :] + b1_ref[h0:h0 + hc, :]
        for i in range(1, d_in):                              # static, tiny D_in
            h = h + w1c[:, i:i + 1] * x[i:i + 1, :]
        h = jnp.maximum(h, 0.0)                               # ReLU
        for o in range(d_out):                                # static, tiny D_out
            ys[o] = ys[o] + jnp.sum(
                h * w2_ref[h0:h0 + hc, o:o + 1], axis=0, keepdims=True)

    # Bias + exact sigmoid (EUP exp; kernel is memory-bound so it's free).
    for o in range(d_out):
        y = ys[o] + b2_ref[o]
        o_ref[o:o + 1, :] = (1.0 / (1.0 + jnp.exp(-y))).astype(o_ref.dtype)


def _pick_tile(batch, d_in, d_out):
    """Lane-axis batch-tile size from a streamed-bytes-per-step budget."""
    stream_bytes = (d_in + d_out) * 4          # f32 bytes in + out per element
    # ~2 MiB streamed per grid step amortizes the ~0.35 us fixed per-step cost
    # while keeping the double-buffered working set a few MiB (fits v5e/v6e
    # scoped VMEM and v7x's 64 MiB per-TC VMEM with hidden-chunking).
    tile = max(128, ((2 << 20) // stream_bytes) // 1024 * 1024)
    # Never tile past the (128-padded) batch.
    tile = min(tile, max(128, pl.cdiv(batch, 128) * 128))
    # Keep >= 4 grid steps for large batches so dimension_semantics=("parallel",)
    # can shard tiles across both v7x TensorCores, but never drop below 32K
    # elements (per-step overhead would dominate again).
    while tile > 32768 and pl.cdiv(batch, tile) < 4:
        tile //= 2
    return max(128, tile)


def simplenet_forward(x_fm, w1, b1, w2, b2, *, tile=None):
    """SimpleNet forward pass.

    Args:
      x_fm: (D_in, B) float32, feature-major.  Producers should supply this
        layout directly (avoids a full HBM transpose pass); use
        `simplenet_forward_torch` for PyTorch (B, D_in) inputs.
      w1:   (H, D_in) fc1.weight (PyTorch layout);  b1: (H,) fc1.bias.
      w2:   (H, D_out) fc2.weight.T;                b2: (D_out,) fc2.bias.
    Returns:
      (B, D_out) sigmoid activations, matching the PyTorch module.
    """
    d_in, batch = x_fm.shape
    h_dim, d_out = w2.shape

    if tile is None:
        tile = _pick_tile(batch, d_in, d_out)
    b_pad = pl.cdiv(batch, tile) * tile

    # Tail-only pad; no-op when the batch is already tile-aligned.
    if b_pad != batch:
        x_fm = jnp.pad(x_fm, ((0, 0), (0, b_pad - batch)))

    b1_col = b1.reshape(h_dim, 1)

    out_t = pl.pallas_call(
        simplenet_kernel,
        out_shape=jax.ShapeDtypeStruct((d_out, b_pad), jnp.float32),
        grid=(b_pad // tile,),
        in_specs=[
            pl.BlockSpec((d_in, tile), lambda i: (0, i)),        # x tile (streamed)
            pl.BlockSpec((h_dim, d_in), lambda i: (0, 0)),       # w1 (resident)
            pl.BlockSpec((h_dim, 1), lambda i: (0, 0)),          # b1 (resident)
            pl.BlockSpec((h_dim, d_out), lambda i: (0, 0)),      # w2 (resident)
            pl.BlockSpec(memory_space=pltpu.MemorySpace.SMEM),   # b2 scalars
        ],
        out_specs=pl.BlockSpec((d_out, tile), lambda i: (0, i)),  # lane-dense
        compiler_params=pltpu.CompilerParams(
            # Batch tiles are independent -> shard across both TCs on v7x.
            dimension_semantics=("parallel",),
            # Headroom for the enlarged double-buffered x/out tiles + hidden
            # chunk temps; <= v7x's 64 MiB per-TC VMEM, well under v5e/v6e.
            vmem_limit_bytes=48 * 1024 * 1024,
        ),
    )(x_fm, w1, b1_col, w2, b2)

    # Drop the padded tail only when there is one (its sigmoid(b2) garbage must
    # not escape); (1, B) -> (B, 1) is layout-identical, so return a reshape.
    if b_pad != batch:
        out_t = out_t[:, :batch]
    if d_out == 1:
        return out_t.reshape(batch, 1)
    return out_t.T


def simplenet_forward_torch(x, w1, b1, w2, b2, **kw):
    """Convenience wrapper for PyTorch-layout inputs: x is (B, D_in)."""
    return simplenet_forward(x.T, w1, b1, w2, b2, **kw)


def init_params(key, input_dim, hidden_dim, output_dim):
    """nn.Linear-style U(-1/sqrt(fan_in), 1/sqrt(fan_in)) init.

    w1 is (hidden, input) like PyTorch fc1.weight; w2 is stored (hidden, output)
    (i.e. PyTorch fc2.weight.T) so the kernel reduces over the sublane axis.
    """
    k1, k2, k3, k4 = jax.random.split(key, 4)
    bound1 = 1.0 / jnp.sqrt(input_dim)
    bound2 = 1.0 / jnp.sqrt(hidden_dim)
    w1 = jax.random.uniform(k1, (hidden_dim, input_dim), jnp.float32, -bound1, bound1)
    b1 = jax.random.uniform(k2, (hidden_dim,), jnp.float32, -bound1, bound1)
    w2 = jax.random.uniform(k3, (hidden_dim, output_dim), jnp.float32, -bound2, bound2)
    b2 = jax.random.uniform(k4, (output_dim,), jnp.float32, -bound2, bound2)
    return w1, b1, w2, b2


if __name__ == "__main__":
    # Moon data shapes: 2 input features -> hidden 32 -> 1 sigmoid output.
    batch, input_dim, hidden_dim, output_dim = 8, 2, 32, 1

    key = jax.random.PRNGKey(0)
    kx, kx2, kp = jax.random.split(key, 3)
    x = jax.random.normal(kx, (batch, input_dim), jnp.float32)
    w1, b1, w2, b2 = init_params(kp, input_dim, hidden_dim, output_dim)

    # Pure-JAX reference (PyTorch semantics).
    def ref_fwd(xin):
        return jax.nn.sigmoid(jnp.maximum(xin @ w1.T + b1, 0.0) @ w2 + b2)

    out = jax.block_until_ready(simplenet_forward_torch(x, w1, b1, w2, b2))
    assert out.shape == (batch, output_dim)
    assert jnp.allclose(out, ref_fwd(x), atol=1e-5, rtol=1e-5), float(
        jnp.max(jnp.abs(out - ref_fwd(x))))

    # Exercise the multi-step grid + ragged-tail (pad/slice) path with a small
    # forced tile: batch=300, tile=128 -> 3 grid steps, 84 padded columns.
    batch2 = 300
    x2 = jax.random.normal(kx2, (batch2, input_dim), jnp.float32)
    out2 = jax.block_until_ready(
        simplenet_forward_torch(x2, w1, b1, w2, b2, tile=128))
    assert out2.shape == (batch2, output_dim)
    assert jnp.allclose(out2, ref_fwd(x2), atol=1e-5, rtol=1e-5), float(
        jnp.max(jnp.abs(out2 - ref_fwd(x2))))

    print("KERNEL_OK")
</pallas_src>

<mosaic_0001>
module attributes {stable_mosaic.version = 11 : i64} {
  func.func @simplenet_kernel(%arg0: i32, %arg1: memref<2x128xf32, #tpu.memory_space<vmem>>, %arg2: memref<32x2xf32, #tpu.memory_space<vmem>>, %arg3: memref<32x1xf32, #tpu.memory_space<vmem>>, %arg4: memref<32x1xf32, #tpu.memory_space<vmem>>, %arg5: memref<1xf32, #tpu.memory_space<smem>>, %arg6: memref<1x128xf32, #tpu.memory_space<vmem>>) attributes {dimension_semantics = [#tpu.dimension_semantics<parallel>], iteration_bounds = array<i64: 1>, scalar_prefetch = 0 : i64, scratch_operands = 0 : i64, tpu.core_type = #tpu.core_type<tc>, window_params = [{transform_indices = @transform_0, window_bounds = array<i64: 2, 128>}, {pipeline_mode = #tpu.pipeline_mode<synchronous>, transform_indices = @transform_1, window_bounds = array<i64: 32, 2>}, {pipeline_mode = #tpu.pipeline_mode<synchronous>, transform_indices = @transform_2, window_bounds = array<i64: 32, 1>}, {pipeline_mode = #tpu.pipeline_mode<synchronous>, transform_indices = @transform_3, window_bounds = array<i64: 32, 1>}, {transform_indices = @transform_4, window_bounds = array<i64: 1>}, {transform_indices = @transform_5, window_bounds = array<i64: 1, 128>}]} {
    %c0 = arith.constant 0 : index
    %c0_0 = arith.constant 0 : index
    %0 = vector.load %arg1[%c0, %c0_0] : memref<2x128xf32, #tpu.memory_space<vmem>>, vector<2x128xf32>
    %cst = arith.constant 0.000000e+00 : f32
    %1 = vector.broadcast %cst : f32 to vector<1x128xf32>
    %c0_1 = arith.constant 0 : index
    %c0_2 = arith.constant 0 : index
    %2 = vector.load %arg2[%c0_1, %c0_2] : memref<32x2xf32, #tpu.memory_space<vmem>>, vector<8x2xf32>
    %3 = vector.extract_strided_slice %2 {offsets = [0, 0], sizes = [8, 1], strides = [1, 1]} : vector<8x2xf32> to vector<8x1xf32>
    %4 = vector.extract_strided_slice %0 {offsets = [0, 0], sizes = [1, 128], strides = [1, 1]} : vector<2x128xf32> to vector<1x128xf32>
    %5 = vector.broadcast %3 : vector<8x1xf32> to vector<8x128xf32>
    %6 = vector.broadcast %4 : vector<1x128xf32> to vector<8x128xf32>
    %7 = arith.mulf %5, %6 : vector<8x128xf32>
    %c0_3 = arith.constant 0 : index
    %c0_4 = arith.constant 0 : index
    %8 = vector.load %arg3[%c0_3, %c0_4] : memref<32x1xf32, #tpu.memory_space<vmem>>, vector<8x1xf32>
    %9 = vector.broadcast %8 : vector<8x1xf32> to vector<8x128xf32>
    %10 = arith.addf %7, %9 : vector<8x128xf32>
    %11 = vector.extract_strided_slice %2 {offsets = [0, 1], sizes = [8, 1], strides = [1, 1]} : vector<8x2xf32> to vector<8x1xf32>
    %12 = vector.extract_strided_slice %0 {offsets = [1, 0], sizes = [1, 128], strides = [1, 1]} : vector<2x128xf32> to vector<1x128xf32>
    %13 = vector.broadcast %11 : vector<8x1xf32> to vector<8x128xf32>
    %14 = vector.broadcast %12 : vector<1x128xf32> to vector<8x128xf32>
    %15 = arith.mulf %13, %14 : vector<8x128xf32>
    %16 = arith.addf %10, %15 : vector<8x128xf32>
    %cst_5 = arith.constant 0.000000e+00 : f32
    %17 = vector.broadcast %cst_5 : f32 to vector<8x128xf32>
    %18 = arith.maximumf %16, %17 : vector<8x128xf32>
    %c0_6 = arith.constant 0 : index
    %c0_7 = arith.constant 0 : index
    %19 = vector.load %arg4[%c0_6, %c0_7] : memref<32x1xf32, #tpu.memory_space<vmem>>, vector<8x1xf32>
    %20 = vector.broadcast %19 : vector<8x1xf32> to vector<8x128xf32>
    %21 = arith.mulf %18, %20 : vector<8x128xf32>
    %cst_8 = arith.constant dense<0.000000e+00> : vector<128xf32>
    %22 = vector.multi_reduction <add>, %21, %cst_8 [0] : vector<8x128xf32> to vector<128xf32>
    %23 = vector.shape_cast %22 : vector<128xf32> to vector<1x128xf32>
    %24 = arith.addf %1, %23 : vector<1x128xf32>
    %c8 = arith.constant 8 : index
    %c0_9 = arith.constant 0 : index
    %25 = vector.load %arg2[%c8, %c0_9] : memref<32x2xf32, #tpu.memory_space<vmem>>, vector<8x2xf32>
    %26 = vector.extract_strided_slice %25 {offsets = [0, 0], sizes = [8, 1], strides = [1, 1]} : vector<8x2xf32> to vector<8x1xf32>
    %27 = vector.extract_strided_slice %0 {offsets = [0, 0], sizes = [1, 128], strides = [1, 1]} : vector<2x128xf32> to vector<1x128xf32>
    %28 = vector.broadcast %26 : vector<8x1xf32> to vector<8x128xf32>
    %29 = vector.broadcast %27 : vector<1x128xf32> to vector<8x128xf32>
    %30 = arith.mulf %28, %29 : vector<8x128xf32>
    %c8_10 = arith.constant 8 : index
    %c0_11 = arith.constant 0 : index
    %31 = vector.load %arg3[%c8_10, %c0_11] : memref<32x1xf32, #tpu.memory_space<vmem>>, vector<8x1xf32>
    %32 = vector.broadcast %31 : vector<8x1xf32> to vector<8x128xf32>
    %33 = arith.addf %30, %32 : vector<8x128xf32>
    %34 = vector.extract_strided_slice %25 {offsets = [0, 1], sizes = [8, 1], strides = [1, 1]} : vector<8x2xf32> to vector<8x1xf32>
    %35 = vector.extract_strided_slice %0 {offsets = [1, 0], sizes = [1, 128], strides = [1, 1]} : vector<2x128xf32> to vector<1x128xf32>
    %36 = vector.broadcast %34 : vector<8x1xf32> to vector<8x128xf32>
    %37 = vector.broadcast %35 : vector<1x128xf32> to vector<8x128xf32>
    %38 = arith.mulf %36, %37 : vector<8x128xf32>
    %39 = arith.addf %33, %38 : vector<8x128xf32>
    %cst_12 = arith.constant 0.000000e+00 : f32
    %40 = vector.broadcast %cst_12 : f32 to vector<8x128xf32>
    %41 = arith.maximumf %39, %40 : vector<8x128xf32>
    %c8_13 = arith.constant 8 : index
    %c0_14 = arith.constant 0 : index
    %42 = vector.load %arg4[%c8_13, %c0_14] : memref<32x1xf32, #tpu.memory_space<vmem>>, vector<8x1xf32>
    %43 = vector.broadcast %42 : vector<8x1xf32> to vector<8x128xf32>
    %44 = arith.mulf %41, %43 : vector<8x128xf32>
    %cst_15 = arith.constant dense<0.000000e+00> : vector<128xf32>
    %45 = vector.multi_reduction <add>, %44, %cst_15 [0] : vector<8x128xf32> to vector<128xf32>
    %46 = vector.shape_cast %45 : vector<128xf32> to vector<1x128xf32>
    %47 = arith.addf %24, %46 : vector<1x128xf32>
    %c16 = arith.constant 16 : index
    %c0_16 = arith.constant 0 : index
    %48 = vector.load %arg2[%c16, %c0_16] : memref<32x2xf32, #tpu.memory_space<vmem>>, vector<8x2xf32>
    %49 = vector.extract_strided_slice %48 {offsets = [0, 0], sizes = [8, 1], strides = [1, 1]} : vector<8x2xf32> to vector<8x1xf32>
    %50 = vector.extract_strided_slice %0 {offsets = [0, 0], sizes = [1, 128], strides = [1, 1]} : vector<2x128xf32> to vector<1x128xf32>
    %51 = vector.broadcast %49 : vector<8x1xf32> to vector<8x128xf32>
    %52 = vector.broadcast %50 : vector<1x128xf32> to vector<8x128xf32>
    %53 = arith.mulf %51, %52 : vector<8x128xf32>
    %c16_17 = arith.constant 16 : index
    %c0_18 = arith.constant 0 : index
    %54 = vector.load %arg3[%c16_17, %c0_18] : memref<32x1xf32, #tpu.memory_space<vmem>>, vector<8x1xf32>
    %55 = vector.broadcast %54 : vector<8x1xf32> to vector<8x128xf32>
    %56 = arith.addf %53, %55 : vector<8x128xf32>
    %57 = vector.extract_strided_slice %48 {offsets = [0, 1], sizes = [8, 1], strides = [1, 1]} : vector<8x2xf32> to vector<8x1xf32>
    %58 = vector.extract_strided_slice %0 {offsets = [1, 0], sizes = [1, 128], strides = [1, 1]} : vector<2x128xf32> to vector<1x128xf32>
    %59 = vector.broadcast %57 : vector<8x1xf32> to vector<8x128xf32>
    %60 = vector.broadcast %58 : vector<1x128xf32> to vector<8x128xf32>
    %61 = arith.mulf %59, %60 : vector<8x128xf32>
    %62 = arith.addf %56, %61 : vector<8x128xf32>
    %cst_19 = arith.constant 0.000000e+00 : f32
    %63 = vector.broadcast %cst_19 : f32 to vector<8x128xf32>
    %64 = arith.maximumf %62, %63 : vector<8x128xf32>
    %c16_20 = arith.constant 16 : index
    %c0_21 = arith.constant 0 : index
    %65 = vector.load %arg4[%c16_20, %c0_21] : memref<32x1xf32, #tpu.memory_space<vmem>>, vector<8x1xf32>
    %66 = vector.broadcast %65 : vector<8x1xf32> to vector<8x128xf32>
    %67 = arith.mulf %64, %66 : vector<8x128xf32>
    %cst_22 = arith.constant dense<0.000000e+00> : vector<128xf32>
    %68 = vector.multi_reduction <add>, %67, %cst_22 [0] : vector<8x128xf32> to vector<128xf32>
    %69 = vector.shape_cast %68 : vector<128xf32> to vector<1x128xf32>
    %70 = arith.addf %47, %69 : vector<1x128xf32>
    %c24 = arith.constant 24 : index
    %c0_23 = arith.constant 0 : index
    %71 = vector.load %arg2[%c24, %c0_23] : memref<32x2xf32, #tpu.memory_space<vmem>>, vector<8x2xf32>
    %72 = vector.extract_strided_slice %71 {offsets = [0, 0], sizes = [8, 1], strides = [1, 1]} : vector<8x2xf32> to vector<8x1xf32>
    %73 = vector.extract_strided_slice %0 {offsets = [0, 0], sizes = [1, 128], strides = [1, 1]} : vector<2x128xf32> to vector<1x128xf32>
    %74 = vector.broadcast %72 : vector<8x1xf32> to vector<8x128xf32>
    %75 = vector.broadcast %73 : vector<1x128xf32> to vector<8x128xf32>
    %76 = arith.mulf %74, %75 : vector<8x128xf32>
    %c24_24 = arith.constant 24 : index
    %c0_25 = arith.constant 0 : index
    %77 = vector.load %arg3[%c24_24, %c0_25] : memref<32x1xf32, #tpu.memory_space<vmem>>, vector<8x1xf32>
    %78 = vector.broadcast %77 : vector<8x1xf32> to vector<8x128xf32>
    %79 = arith.addf %76, %78 : vector<8x128xf32>
    %80 = vector.extract_strided_slice %71 {offsets = [0, 1], sizes = [8, 1], strides = [1, 1]} : vector<8x2xf32> to vector<8x1xf32>
    %81 = vector.extract_strided_slice %0 {offsets = [1, 0], sizes = [1, 128], strides = [1, 1]} : vector<2x128xf32> to vector<1x128xf32>
    %82 = vector.broadcast %80 : vector<8x1xf32> to vector<8x128xf32>
    %83 = vector.broadcast %81 : vector<1x128xf32> to vector<8x128xf32>
    %84 = arith.mulf %82, %83 : vector<8x128xf32>
    %85 = arith.addf %79, %84 : vector<8x128xf32>
    %cst_26 = arith.constant 0.000000e+00 : f32
    %86 = vector.broadcast %cst_26 : f32 to vector<8x128xf32>
    %87 = arith.maximumf %85, %86 : vector<8x128xf32>
    %c24_27 = arith.constant 24 : index
    %c0_28 = arith.constant 0 : index
    %88 = vector.load %arg4[%c24_27, %c0_28] : memref<32x1xf32, #tpu.memory_space<vmem>>, vector<8x1xf32>
    %89 = vector.broadcast %88 : vector<8x1xf32> to vector<8x128xf32>
    %90 = arith.mulf %87, %89 : vector<8x128xf32>
    %cst_29 = arith.constant dense<0.000000e+00> : vector<128xf32>
    %91 = vector.multi_reduction <add>, %90, %cst_29 [0] : vector<8x128xf32> to vector<128xf32>
    %92 = vector.shape_cast %91 : vector<128xf32> to vector<1x128xf32>
    %93 = arith.addf %70, %92 : vector<1x128xf32>
    %c0_30 = arith.constant 0 : index
    %94 = memref.load %arg5[%c0_30] : memref<1xf32, #tpu.memory_space<smem>>
    %95 = vector.broadcast %94 : f32 to vector<1x128xf32>
    %96 = arith.addf %93, %95 : vector<1x128xf32>
    %cst_31 = arith.constant 0.000000e+00 : f32
    %97 = vector.broadcast %cst_31 : f32 to vector<1x128xf32>
    %98 = arith.subf %97, %96 : vector<1x128xf32>
    %99 = math.exp %98 : vector<1x128xf32>
    %cst_32 = arith.constant 1.000000e+00 : f32
    %100 = vector.broadcast %cst_32 : f32 to vector<1x128xf32>
    %101 = arith.addf %100, %99 : vector<1x128xf32>
    %cst_33 = arith.constant 1.000000e+00 : f32
    %102 = vector.broadcast %cst_33 : f32 to vector<1x128xf32>
    %103 = arith.divf %102, %101 : vector<1x128xf32>
    %c0_34 = arith.constant 0 : index
    %c0_35 = arith.constant 0 : index
    %104 = vector.load %arg6[%c0_34, %c0_35] : memref<1x128xf32, #tpu.memory_space<vmem>>, vector<1x128xf32>
    tpu.vector_store %arg6[%c0_34, %c0_35], %103 {strides = array<i32>} : memref<1x128xf32, #tpu.memory_space<vmem>>, vector<1x128xf32>,
    return
  }
  func.func @transform_0(%arg0: i32) -> (i32, i32) {
    %c0_i32 = arith.constant 0 : i32
    %c0_i32_0 = arith.constant 0 : i32
    return %c0_i32, %arg0 : i32, i32
  }
  func.func @transform_1(%arg0: i32) -> (i32, i32) {
    %c0_i32 = arith.constant 0 : i32
    %c0_i32_0 = arith.constant 0 : i32
    %c0_i32_1 = arith.constant 0 : i32
    return %c0_i32, %c0_i32_0 : i32, i32
  }
  func.func @transform_2(%arg0: i32) -> (i32, i32) {
    %c0_i32 = arith.constant 0 : i32
    %c0_i32_0 = arith.constant 0 : i32
    %c0_i32_1 = arith.constant 0 : i32
    return %c0_i32, %c0_i32_0 : i32, i32
  }
  func.func @transform_3(%arg0: i32) -> (i32, i32) {
    %c0_i32 = arith.constant 0 : i32
    %c0_i32_0 = arith.constant 0 : i32
    %c0_i32_1 = arith.constant 0 : i32
    return %c0_i32, %c0_i32_0 : i32, i32
  }
  func.func @transform_4(%arg0: i32) -> i32 {
    %c0_i32 = arith.constant 0 : i32
    %c0_i32_0 = arith.constant 0 : i32
    return %c0_i32 : i32
  }
  func.func @transform_5(%arg0: i32) -> (i32, i32) {
    %c0_i32 = arith.constant 0 : i32
    %c0_i32_0 = arith.constant 0 : i32
    return %c0_i32, %arg0 : i32, i32
  }
}

</mosaic_0001>

<llo_original>
// kernel: tpu_custom_call.1
$region0: #{tpu_custom_call.1}
  #allocation0 [shape = 'u32[]', space=smem, size = 0x4, offset = 0x4, fixed_abs, tag = 'smem constant byte address 0x4 - core index']
  #allocation1 [shape = 'u32[144,128]{1,0:T(1,128)}', space=vmem, size = 0x12000, scoped, tag = 'internal scratch']
  #allocation2 [shape = 'f32[1]{0:T(128)S(6)}', space=smem, size = 0x200, scoped, tag = 'scoped memory for tpu_custom_call.1']
  %s0 = inlined_call_operand.vmem [shape: f32[2,128], index: 0, kind: input, shape index: {}]
  %s1 = inlined_call_operand.vmem [shape: f32[32,2], index: 1, kind: input, shape index: {}]
  %s2 = inlined_call_operand.vmem [shape: f32[32,1], index: 2, kind: input, shape index: {}]
  %s3 = inlined_call_operand.vmem [shape: f32[32,1], index: 3, kind: input, shape index: {}]
  %s4 = inlined_call_operand.<no memory space> [shape: f32[1], index: 4, kind: input, shape index: {}]
  %s5 = inlined_call_operand.hbm [shape: f32[1,128], index: 5, kind: output, shape index: {}]
  %s6 = sld [smem:[#allocation0]]
  $region30: #{tpu_custom_call.1} parent=0
    _
  %s8 = ssub.s32 1, %s6
  %s9 = scalar_select 0, %s8, %s6
  %10 = sst [smem:[#allocation2]] %s4
  $region1: #{tpu_custom_call.1} parent=0
    #allocation3 [shape = 'u8[512]{0}', space=vmem, size = 0x400, scoped, tag = 'output window, operand 0, single buffered']
    #allocation4 [shape = 's32[1]{0}', space=sflag, size = 0x4, scoped, tag = 'scoped memory for tpu_custom_call.1']
    %11 = vsyncpa [#allocation4], 0
    // Predicated region
    $region2: #{tpu_custom_call.1} parent=1 // pred_check
      _
    $region3: #{tpu_custom_call.1} parent=1 // pred_check_branch
      %13 = sbr.rel (0) target = $region5
    $region4: #{tpu_custom_call.1} parent=1 // pred_region
      _
    $region5: #{tpu_custom_call.1} parent=1 // pred_fallthru
      _
    // Predicated region
    $region6: #{tpu_custom_call.1} parent=1 // pred_check
      _
    $region7: #{tpu_custom_call.1} parent=1 // pred_check_branch
      %15 = sbr.rel (0) target = $region9
    $region8: #{tpu_custom_call.1} parent=1 // pred_region
      _
    $region9: #{tpu_custom_call.1} parent=1 // pred_fallthru
      _
    // Predicated region
    $region10: #{tpu_custom_call.1} parent=1 // pred_check
      _
    $region11: #{tpu_custom_call.1} parent=1 // pred_check_branch
      %17 = sbr.rel (0) target = $region13
    $region12: #{tpu_custom_call.1} parent=1 // pred_region
      _
    $region13: #{tpu_custom_call.1} parent=1 // pred_fallthru
      _
    // Predicated region
    $region14: #{tpu_custom_call.1} parent=1 // pred_check
      _
    $region15: #{tpu_custom_call.1} parent=1 // pred_check_branch
      %19 = sbr.rel (0) target = $region17
    $region16: #{tpu_custom_call.1} parent=1 // pred_region
      _
    $region17: #{tpu_custom_call.1} parent=1 // pred_fallthru
      _
    // Predicated region
    $region18: #{tpu_custom_call.1} parent=1 // pred_check
      _
    $region19: #{tpu_custom_call.1} parent=1 // pred_check_branch
      %21 = sbr.rel (0) target = $region21
    $region20: #{tpu_custom_call.1} parent=1 // pred_region
      _
    $region21: #{tpu_custom_call.1} parent=1 // pred_fallthru
      _
    %v22 = vld [vmem:[%s0] sm:$0x3]
    %v23 = vld [vmem:[%s1] sm:$0xff]
    %25 = vset.pattern.permute.xlu0 0
    %26 = vperm.xlu0 %25, %v23
    %v27 = vpop.permute.xlu0 %26
    %v29 = vlaneseq
    %v30 = vshrl.u32 %v29, 7
    %v31 = vsub.s32 0, %v30
    %v32 = vrot.slane %v22, %v31
    %v33 = vmul.f32 %v27, %v32
    %v34 = vld [vmem:[%s2] sm:$0xff]
    %36 = vset.pattern.permute.xlu0 0
    %37 = vperm.xlu0 %36, %v34
    %v38 = vpop.permute.xlu0 %37
    %v40 = vadd.f32 %v33, %v38
    %41 = vset.pattern.permute.xlu0 1
    %42 = vperm.xlu0 %41, %v23
    %v43 = vpop.permute.xlu0 %42
    %v45 = vlaneseq
    %v46 = vshrl.u32 %v45, 7
    %v47 = vsub.s32 1, %v46
    %v48 = vrot.slane %v22, %v47
    %v49 = vmul.f32 %v43, %v48
    %v50 = vadd.f32 %v40, %v49
    %v51 = vmax.f32 %v50, 0.0
    %v52 = vld [vmem:[%s3] sm:$0xff]
    %54 = vset.pattern.permute.xlu0 0
    %55 = vperm.xlu0 %54, %v52
    %v56 = vpop.permute.xlu0 %55
    %v58 = vmul.f32 %v51, %v56
    %v59 = vrot.slane %v58, 4
    %v60 = vadd.f32 %v58, %v59
    %v61 = vrot.slane %v60, 2
    %v62 = vadd.f32 %v60, %v61
    %v63 = vrot.slane %v62, 1
    %v64 = vadd.f32 %v62, %v63
    %v65 = vadd.f32 %v64, 0.0
    %v66 = vld [vmem:[%s1 + $0x8] sm:$0xff]
    %68 = vset.pattern.permute.xlu0 0
    %69 = vperm.xlu0 %68, %v66
    %v70 = vpop.permute.xlu0 %69
    %v72 = vmul.f32 %v70, %v32
    %v73 = vld [vmem:[%s2 + $0x8] sm:$0xff]
    %75 = vset.pattern.permute.xlu0 0
    %76 = vperm.xlu0 %75, %v73
    %v77 = vpop.permute.xlu0 %76
    %v79 = vadd.f32 %v72, %v77
    %80 = vset.pattern.permute.xlu0 1
    %81 = vperm.xlu0 %80, %v66
    %v82 = vpop.permute.xlu0 %81
    %v84 = vmul.f32 %v82, %v48
    %v85 = vadd.f32 %v79, %v84
    %v86 = vmax.f32 %v85, 0.0
    %v87 = vld [vmem:[%s3 + $0x8] sm:$0xff]
    %89 = vset.pattern.permute.xlu0 0
    %90 = vperm.xlu0 %89, %v87
    %v91 = vpop.permute.xlu0 %90
    %v93 = vmul.f32 %v86, %v91
    %v94 = vrot.slane %v93, 4
    %v95 = vadd.f32 %v93, %v94
    %v96 = vrot.slane %v95, 2
    %v97 = vadd.f32 %v95, %v96
    %v98 = vrot.slane %v97, 1
    %v99 = vadd.f32 %v97, %v98
    %v100 = vadd.f32 %v65, %v99
    %v101 = vld [vmem:[%s1 + $0x10] sm:$0xff]
    %103 = vset.pattern.permute.xlu0 0
    %104 = vperm.xlu0 %103, %v101
    %v105 = vpop.permute.xlu0 %104
    %v107 = vmul.f32 %v105, %v32
    %v108 = vld [vmem:[%s2 + $0x10] sm:$0xff]
    %110 = vset.pattern.permute.xlu0 0
    %111 = vperm.xlu0 %110, %v108
    %v112 = vpop.permute.xlu0 %111
    %v114 = vadd.f32 %v107, %v112
    %115 = vset.pattern.permute.xlu0 1
    %116 = vperm.xlu0 %115, %v101
    %v117 = vpop.permute.xlu0 %116
    %v119 = vmul.f32 %v117, %v48
    %v120 = vadd.f32 %v114, %v119
    %v121 = vmax.f32 %v120, 0.0
    %v122 = vld [vmem:[%s3 + $0x10] sm:$0xff]
    %124 = vset.pattern.permute.xlu0 0
    %125 = vperm.xlu0 %124, %v122
    %v126 = vpop.permute.xlu0 %125
    %v128 = vmul.f32 %v121, %v126
    %v129 = vrot.slane %v128, 4
    %v130 = vadd.f32 %v128, %v129
    %v131 = vrot.slane %v130, 2
    %v132 = vadd.f32 %v130, %v131
    %v133 = vrot.slane %v132, 1
    %v134 = vadd.f32 %v132, %v133
    %v135 = vadd.f32 %v100, %v134
    %v136 = vld [vmem:[%s1 + $0x18] sm:$0xff]
    %138 = vset.pattern.permute.xlu0 0
    %139 = vperm.xlu0 %138, %v136
    %v140 = vpop.permute.xlu0 %139
    %v142 = vmul.f32 %v140, %v32
    %v143 = vld [vmem:[%s2 + $0x18] sm:$0xff]
    %145 = vset.pattern.permute.xlu0 0
    %146 = vperm.xlu0 %145, %v143
    %v147 = vpop.permute.xlu0 %146
    %v149 = vadd.f32 %v142, %v147
    %150 = vset.pattern.permute.xlu0 1
    %151 = vperm.xlu0 %150, %v136
    %v152 = vpop.permute.xlu0 %151
    %v154 = vmul.f32 %v152, %v48
    %v155 = vadd.f32 %v149, %v154
    %v156 = vmax.f32 %v155, 0.0
    %v157 = vld [vmem:[%s3 + $0x18] sm:$0xff]
    %159 = vset.pattern.permute.xlu0 0
    %160 = vperm.xlu0 %159, %v157
    %v161 = vpop.permute.xlu0 %160
    %v163 = vmul.f32 %v156, %v161
    %v164 = vrot.slane %v163, 4
    %v165 = vadd.f32 %v163, %v164
    %v166 = vrot.slane %v165, 2
    %v167 = vadd.f32 %v165, %v166
    %v168 = vrot.slane %v167, 1
    %v169 = vadd.f32 %v167, %v168
    %v170 = vadd.f32 %v135, %v169
    %s171 = sld [smem:[#allocation2]]
    %v172 = vstv %s171
    %v173 = vadd.f32 %v170, %v172
    %v174 = vsub.f32 0.0, %v173
    %v175 = vmul.f32 %v174, 1.442695
    %v176 = vpow.pop %v175
    %v177 = vadd.f32 %v176, 1.0
    %v178 = vrcp.pop %v177
    %v179 = vmul.f32 1.0, %v178
    %180 = vst [vmem:[#allocation3] sm:$0x1] %v179
    // Predicated region
    $region22: #{tpu_custom_call.1} parent=1 // pred_check
      _
    $region23: #{tpu_custom_call.1} parent=1 // pred_check_branch
      %182 = sbr.rel (0) target = $region25
    $region24: #{tpu_custom_call.1} parent=1 // pred_region
      %s184 = ssub.s32 16, 16
      %185 = vsyncadd [#allocation4], %s184
      %s187 = sshll.u32 [#allocation3], 4
      %s188 = int_to_ptr.vmem [resolvable:$true] %s187
      %190 = dma.vmem_to_hbm [thread:$0]  %s188, 16, %s5, [#allocation4]
    $region25: #{tpu_custom_call.1} parent=1 // pred_fallthru
      _
    // Predicated region
    $region26: #{tpu_custom_call.1} parent=1 // pred_check
      _
    $region27: #{tpu_custom_call.1} parent=1 // pred_check_branch
      %192 = sbr.rel (0) target = $region29
    $region28: #{tpu_custom_call.1} parent=1 // pred_region
      %193 = dma.done [#allocation4], 16
    $region29: #{tpu_custom_call.1} parent=1 // pred_fallthru
      _
    %194 = vsyncpa [#allocation4], 1

</llo_original>
